<compile_context>
chip_gen: v7x
topology: tpu7x:2x2x1
jax: 0.10.0
libtpu: 0.0.40
codegen_flags: <defaults>
</compile_context>

<pallas_src>
import math
import jax
import jax.numpy as jnp
from jax.experimental import pallas as pl
from jax.experimental.pallas import tpu as pltpu

# Small, forward-consistent shapes.
B = 2            # batch
L = 8            # sequence length
H = 32           # hidden size
F = 64           # feed-forward size
C = 4            # num classes
V = 50           # vocab size
BL = B * L       # flattened tokens
CPAD = 128       # lane-padded classifier width (lane-dense output)
LN_EPS = 1e-12

# ---- packed-weight slab layouts ------------------------------------------
# W slab (bf16, matmul operands), (W_ROWS, 128):
#   rows 0 : H        lanes 0:3H  = [wq*1/sqrt(H) | wk | wv], lanes 3H:4H = wo
#   rows H : 2H       lanes 0:F   = w1
#   rows 2H: 2H+F     lanes 0:H   = w2
#   rows 2H+F : 3H+F  lanes 0:128 = wc (zero-padded beyond C)
W_ROWS = 3 * H + F          # 160
# V slab (f32, elementwise operands), (V_ROWS, 128):
#   row 0: [bq*1/sqrt(H) | bk | bv | bo]
#   row 1: [g1 | be1 | g2 | be2]
#   row 2: [b1 (F lanes) | b2 (H lanes)]
#   row 3: bc (zero-padded to 128 lanes)
V_ROWS = 8


def _layernorm(x, g, b):
    mu = jnp.mean(x, axis=-1, keepdims=True)
    var = jnp.mean((x - mu) ** 2, axis=-1, keepdims=True)
    return (x - mu) * jax.lax.rsqrt(var + LN_EPS) * g + b


def seq_classifier_kernel(x_ref, w_ref, v_ref, mask_ref, pool_ref, out_ref):
    # x_ref: (BL,H) f32   w_ref: (160,128) bf16   v_ref: (8,128) f32
    # mask_ref: (BL,BL) f32 additive   pool_ref: (B,BL) f32   out_ref: (B,128) f32
    x = x_ref[...]                                   # (BL, H) f32, whole batch
    x_bf = x.astype(jnp.bfloat16)

    # static views into the packed weight slabs
    w_attn = w_ref[0:H, :]                           # (H, 128): [wq' | wk | wv | wo]
    w1 = w_ref[H:2 * H, 0:F]                         # (H, F)
    w2 = w_ref[2 * H:2 * H + F, 0:H]                 # (F, H)
    wc = w_ref[2 * H + F:3 * H + F, :]               # (H, CPAD)

    vrows = v_ref[...]                               # (V_ROWS, 128) f32
    b_attn = vrows[0:1, :]                           # [bq' | bk | bv | bo]
    g1, be1 = vrows[1:2, 0:H], vrows[1:2, H:2 * H]
    g2, be2 = vrows[1:2, 2 * H:3 * H], vrows[1:2, 3 * H:4 * H]
    b1 = vrows[2:3, 0:F]
    b2 = vrows[2:3, F:F + H]
    bc = vrows[3:4, :]                               # (1, CPAD)

    # --- self-attention (single head, stand-in for AutoModel encoder) ------
    # Fused QKV projection: one MXU call over all 128 lanes (lanes 3H:4H are a
    # discarded x@wo byproduct; same cost, the MXU does 128 lanes regardless).
    qkvx = jnp.dot(x_bf, w_attn, preferred_element_type=jnp.float32) + b_attn
    q = qkvx[:, 0:H]                                 # already scaled by 1/sqrt(H)
    k = qkvx[:, H:2 * H]
    v = qkvx[:, 2 * H:3 * H]

    # contract last dims directly -> no materialized transpose of k
    scores = jax.lax.dot_general(
        q, k, dimension_numbers=(((1,), (1,)), ((), ())),
        preferred_element_type=jnp.float32)          # (BL, BL)
    # host-built block-diagonal + key-padding additive mask (0 / -1e9).
    # NOTE: lengths >= 1 so no row is fully masked; padded query rows are
    # dropped again at pooling time.
    scores = scores + mask_ref[...]

    m = jnp.max(scores, axis=-1, keepdims=True)
    p = jnp.exp(scores - m)
    att = p * pl.reciprocal(jnp.sum(p, axis=-1, keepdims=True), approx=True)

    ctx = jnp.dot(att, v, preferred_element_type=jnp.float32)        # (BL, H)
    wo = w_attn[:, 3 * H:4 * H]
    bo = b_attn[:, 3 * H:4 * H]
    attn_out = jnp.dot(ctx.astype(jnp.bfloat16), wo,
                       preferred_element_type=jnp.float32) + bo

    h1 = _layernorm(x + attn_out, g1, be1)

    # --- feed-forward -------------------------------------------------------
    ff = jnp.dot(h1.astype(jnp.bfloat16), w1,
                 preferred_element_type=jnp.float32) + b1
    # TODO(synk): torch.nn.GELU / HF-BERT use the exact erf GELU; the tanh
    #             approximation is used here (and in the reference) so the
    #             kernel relies only on guaranteed Mosaic lowerings.
    ff = jax.nn.gelu(ff, approximate=True)
    ff = jnp.dot(ff.astype(jnp.bfloat16), w2,
                 preferred_element_type=jnp.float32) + b2

    h2 = _layernorm(h1 + ff, g2, be2)                # last_hidden_state (BL, H)

    # --- Bert.forward pooling as one matmul with exact host-built weights ---
    pooled = jnp.dot(pool_ref[...], h2, preferred_element_type=jnp.float32)  # (B, H)

    # --- linear classifier (lane-padded to CPAD, lane-dense store) ----------
    logits = jnp.dot(pooled.astype(jnp.bfloat16), wc,
                     preferred_element_type=jnp.float32) + bc
    out_ref[...] = logits                            # (B, CPAD)


def pack_weight_slabs(p):
    """Pack all 18 weights/biases into a bf16 matmul slab + an f32 bias slab."""
    scale = 1.0 / math.sqrt(H)
    w = jnp.zeros((W_ROWS, 128), jnp.float32)
    w = w.at[0:H, 0:H].set(p["wq"] * scale)          # attention scale folded in
    w = w.at[0:H, H:2 * H].set(p["wk"])
    w = w.at[0:H, 2 * H:3 * H].set(p["wv"])
    w = w.at[0:H, 3 * H:4 * H].set(p["wo"])
    w = w.at[H:2 * H, 0:F].set(p["w1"])
    w = w.at[2 * H:2 * H + F, 0:H].set(p["w2"])
    w = w.at[2 * H + F:3 * H + F, 0:C].set(p["wc"])  # zero-padded to CPAD lanes
    w = w.astype(jnp.bfloat16)                       # native MXU input dtype

    v = jnp.zeros((V_ROWS, 128), jnp.float32)
    v = v.at[0, 0:H].set(p["bq"][0] * scale)
    v = v.at[0, H:2 * H].set(p["bk"][0])
    v = v.at[0, 2 * H:3 * H].set(p["bv"][0])
    v = v.at[0, 3 * H:4 * H].set(p["bo"][0])
    v = v.at[1, 0:H].set(p["g1"][0])
    v = v.at[1, H:2 * H].set(p["be1"][0])
    v = v.at[1, 2 * H:3 * H].set(p["g2"][0])
    v = v.at[1, 3 * H:4 * H].set(p["be2"][0])
    v = v.at[2, 0:F].set(p["b1"][0])
    v = v.at[2, F:F + H].set(p["b2"][0])
    v = v.at[3, 0:C].set(p["bc"][0])
    return w, v


def build_mask_and_pool(lengths):
    """Host-side additive attention mask and exact mean-pooling matrix."""
    tok = jnp.arange(BL)
    bi = tok // L                                    # batch of each flat token
    pos = tok % L
    key_valid = pos < lengths[bi]                    # (BL,) prefix padding mask
    same_batch = bi[:, None] == bi[None, :]
    valid = same_batch & key_valid[None, :]
    mask_add = jnp.where(valid, 0.0, -1e9).astype(jnp.float32)       # (BL, BL)

    sel = (bi[None, :] == jnp.arange(B)[:, None]) & key_valid[None, :]  # (B, BL)
    inv_len = 1.0 / lengths.astype(jnp.float32)      # exact 1/length
    pool_mat = sel.astype(jnp.float32) * inv_len[:, None]             # (B, BL)
    return mask_add, pool_mat


def sequence_classifier(x_emb, w_slab, v_slab, mask_add, pool_mat):
    """x_emb: (B, L, H) f32; slabs/mask/pool from the host-side builders."""
    x_flat = x_emb.reshape(BL, H).astype(jnp.float32)
    out = pl.pallas_call(
        seq_classifier_kernel,
        out_shape=jax.ShapeDtypeStruct((B, CPAD), jnp.float32),
        in_specs=[
            pl.BlockSpec(memory_space=pltpu.MemorySpace.VMEM),   # x_flat (BL, H) f32
            pl.BlockSpec(memory_space=pltpu.MemorySpace.VMEM),   # W slab bf16
            pl.BlockSpec(memory_space=pltpu.MemorySpace.VMEM),   # V slab f32
            pl.BlockSpec(memory_space=pltpu.MemorySpace.VMEM),   # additive attn mask
            pl.BlockSpec(memory_space=pltpu.MemorySpace.VMEM),   # pooling matrix
        ],
        out_specs=pl.BlockSpec(memory_space=pltpu.MemorySpace.VMEM),
    )(x_flat, w_slab, v_slab, mask_add, pool_mat)
    return out[:, :C]


def init_params(key):
    ks = jax.random.split(key, 16)
    s = 0.02
    return {
        "emb": jax.random.normal(ks[0], (V, H), jnp.float32) * s,
        "pos": jax.random.normal(ks[1], (L, H), jnp.float32) * s,
        "wq": jax.random.normal(ks[2], (H, H), jnp.float32) * s,
        "bq": jnp.zeros((1, H), jnp.float32),
        "wk": jax.random.normal(ks[3], (H, H), jnp.float32) * s,
        "bk": jnp.zeros((1, H), jnp.float32),
        "wv": jax.random.normal(ks[4], (H, H), jnp.float32) * s,
        "bv": jnp.zeros((1, H), jnp.float32),
        "wo": jax.random.normal(ks[5], (H, H), jnp.float32) * s,
        "bo": jnp.zeros((1, H), jnp.float32),
        "g1": jnp.ones((1, H), jnp.float32),
        "be1": jnp.zeros((1, H), jnp.float32),
        "w1": jax.random.normal(ks[6], (H, F), jnp.float32) * s,
        "b1": jnp.zeros((1, F), jnp.float32),
        "w2": jax.random.normal(ks[7], (F, H), jnp.float32) * s,
        "b2": jnp.zeros((1, H), jnp.float32),
        "g2": jnp.ones((1, H), jnp.float32),
        "be2": jnp.zeros((1, H), jnp.float32),
        "wc": jax.random.normal(ks[8], (H, C), jnp.float32) * s,
        "bc": jnp.zeros((1, C), jnp.float32),
    }


def reference_forward(x_emb, lengths, p):
    """Pure-JAX f32 reference of the same forward pass (exact divisions)."""
    outs = []
    for b in range(B):
        x = x_emb[b]
        m = (jnp.arange(L) < lengths[b]).astype(jnp.float32)
        q = x @ p["wq"] + p["bq"]
        k = x @ p["wk"] + p["bk"]
        v = x @ p["wv"] + p["bv"]
        s = (q @ k.T) / math.sqrt(H)
        s = jnp.where(m[None, :] > 0, s, -1e9)
        a = jax.nn.softmax(s, axis=-1)
        ao = (a @ v) @ p["wo"] + p["bo"]
        h1 = _layernorm(x + ao, p["g1"], p["be1"])
        ff = jax.nn.gelu(h1 @ p["w1"] + p["b1"], approximate=True) @ p["w2"] + p["b2"]
        h2 = _layernorm(h1 + ff, p["g2"], p["be2"])
        pooled = jnp.sum(h2 * m[:, None], axis=0) / lengths[b].astype(jnp.float32)
        outs.append(pooled @ p["wc"] + p["bc"][0])
    return jnp.stack(outs)


if __name__ == "__main__":
    key = jax.random.PRNGKey(0)
    k_ids, k_params = jax.random.split(key)

    params = init_params(k_params)
    w_slab, v_slab = pack_weight_slabs(params)

    # batch = (input_ids, attention_mask, lengths); the attention mask is the
    # prefix padding mask implied by `lengths`, folded host-side into the
    # additive score mask and the exact pooling matrix.
    input_ids = jax.random.randint(k_ids, (B, L), 0, V)
    lengths = jnp.array([L, L - 3], dtype=jnp.int32)
    mask_add, pool_mat = build_mask_and_pool(lengths)

    # Embedding lookup (glue; gather stays in plain JAX).
    x_emb = (params["emb"][input_ids] + params["pos"][None, :, :]).astype(jnp.float32)

    logits = sequence_classifier(x_emb, w_slab, v_slab, mask_add, pool_mat)
    jax.block_until_ready(logits)
    assert logits.shape == (B, C)

    # Sanity check vs. pure-JAX f32 reference; residual error is dominated by
    # bf16 rounding of the matmul operands (typically ~1e-4 at these scales).
    ref = reference_forward(x_emb, lengths, params)
    max_err = float(jnp.max(jnp.abs(logits - ref)))
    assert max_err < 1e-2, f"mismatch vs reference: {max_err}"

    print("KERNEL_OK")
</pallas_src>

<mosaic_0001>
module attributes {stable_mosaic.version = 11 : i64} {
  func.func @seq_classifier_kernel(%arg0: memref<16x32xf32, #tpu.memory_space<vmem>>, %arg1: memref<160x128xbf16, #tpu.memory_space<vmem>>, %arg2: memref<8x128xf32, #tpu.memory_space<vmem>>, %arg3: memref<16x16xf32, #tpu.memory_space<vmem>>, %arg4: memref<2x16xf32, #tpu.memory_space<vmem>>, %arg5: memref<2x128xf32, #tpu.memory_space<vmem>>) attributes {dimension_semantics = [], scalar_prefetch = 0 : i64, scratch_operands = 0 : i64, tpu.core_type = #tpu.core_type<tc>} {
    %c0 = arith.constant 0 : index
    %c0_0 = arith.constant 0 : index
    %0 = vector.load %arg0[%c0, %c0_0] : memref<16x32xf32, #tpu.memory_space<vmem>>, vector<16x32xf32>
    %1 = arith.truncf %0 : vector<16x32xf32> to vector<16x32xbf16>
    %c0_1 = arith.constant 0 : index
    %c0_2 = arith.constant 0 : index
    %2 = vector.load %arg1[%c0_1, %c0_2] : memref<160x128xbf16, #tpu.memory_space<vmem>>, vector<32x128xbf16>
    %c32 = arith.constant 32 : index
    %c0_3 = arith.constant 0 : index
    %3 = vector.load %arg1[%c32, %c0_3] : memref<160x128xbf16, #tpu.memory_space<vmem>>, vector<32x64xbf16>
    %c64 = arith.constant 64 : index
    %c0_4 = arith.constant 0 : index
    %4 = vector.load %arg1[%c64, %c0_4] : memref<160x128xbf16, #tpu.memory_space<vmem>>, vector<64x32xbf16>
    %c128 = arith.constant 128 : index
    %c0_5 = arith.constant 0 : index
    %5 = vector.load %arg1[%c128, %c0_5] : memref<160x128xbf16, #tpu.memory_space<vmem>>, vector<32x128xbf16>
    %c0_6 = arith.constant 0 : index
    %c0_7 = arith.constant 0 : index
    %6 = vector.load %arg2[%c0_6, %c0_7] : memref<8x128xf32, #tpu.memory_space<vmem>>, vector<8x128xf32>
    %7 = vector.extract_strided_slice %6 {offsets = [0, 0], sizes = [1, 128], strides = [1, 1]} : vector<8x128xf32> to vector<1x128xf32>
    %8 = vector.extract_strided_slice %6 {offsets = [1, 0], sizes = [1, 32], strides = [1, 1]} : vector<8x128xf32> to vector<1x32xf32>
    %9 = vector.extract_strided_slice %6 {offsets = [1, 32], sizes = [1, 32], strides = [1, 1]} : vector<8x128xf32> to vector<1x32xf32>
    %10 = vector.extract_strided_slice %6 {offsets = [1, 64], sizes = [1, 32], strides = [1, 1]} : vector<8x128xf32> to vector<1x32xf32>
    %11 = vector.extract_strided_slice %6 {offsets = [1, 96], sizes = [1, 32], strides = [1, 1]} : vector<8x128xf32> to vector<1x32xf32>
    %12 = vector.extract_strided_slice %6 {offsets = [2, 0], sizes = [1, 64], strides = [1, 1]} : vector<8x128xf32> to vector<1x64xf32>
    %13 = vector.extract_strided_slice %6 {offsets = [2, 64], sizes = [1, 32], strides = [1, 1]} : vector<8x128xf32> to vector<1x32xf32>
    %14 = vector.extract_strided_slice %6 {offsets = [3, 0], sizes = [1, 128], strides = [1, 1]} : vector<8x128xf32> to vector<1x128xf32>
    %cst = arith.constant dense<0.000000e+00> : vector<16x128xf32>
    %15 = tpu.matmul %1, %2, %cst {dimension_numbers = #tpu.dot_dimension_numbers<[1], [0], [0], [1], [0, 0, 1, 1], [], []>} : vector<16x32xbf16>, vector<32x128xbf16>, vector<16x128xf32> -> vector<16x128xf32>
    %16 = vector.broadcast %7 : vector<1x128xf32> to vector<16x128xf32>
    %17 = arith.addf %15, %16 : vector<16x128xf32>
    %18 = vector.extract_strided_slice %17 {offsets = [0, 0], sizes = [16, 32], strides = [1, 1]} : vector<16x128xf32> to vector<16x32xf32>
    %19 = vector.extract_strided_slice %17 {offsets = [0, 32], sizes = [16, 32], strides = [1, 1]} : vector<16x128xf32> to vector<16x32xf32>
    %20 = vector.extract_strided_slice %17 {offsets = [0, 64], sizes = [16, 32], strides = [1, 1]} : vector<16x128xf32> to vector<16x32xf32>
    %cst_8 = arith.constant dense<0.000000e+00> : vector<16x16xf32>
    %21 = tpu.matmul %18, %19, %cst_8 {dimension_numbers = #tpu.dot_dimension_numbers<[1], [1], [0], [0], [0, 0, 1, 0], [], []>} : vector<16x32xf32>, vector<16x32xf32>, vector<16x16xf32> -> vector<16x16xf32>
    %c0_9 = arith.constant 0 : index
    %c0_10 = arith.constant 0 : index
    %22 = vector.load %arg3[%c0_9, %c0_10] : memref<16x16xf32, #tpu.memory_space<vmem>>, vector<16x16xf32>
    %23 = arith.addf %21, %22 : vector<16x16xf32>
    %cst_11 = arith.constant dense<0xFF800000> : vector<16xf32>
    %24 = vector.multi_reduction <maximumf>, %23, %cst_11 [1] : vector<16x16xf32> to vector<16xf32>
    %25 = vector.shape_cast %24 : vector<16xf32> to vector<16x1xf32>
    %26 = vector.broadcast %25 : vector<16x1xf32> to vector<16x16xf32>
    %27 = arith.subf %23, %26 : vector<16x16xf32>
    %28 = math.exp %27 : vector<16x16xf32>
    %cst_12 = arith.constant dense<0.000000e+00> : vector<16xf32>
    %29 = vector.multi_reduction <add>, %28, %cst_12 [1] : vector<16x16xf32> to vector<16xf32>
    %30 = vector.shape_cast %29 : vector<16xf32> to vector<16x1xf32>
    %31 = tpu.reciprocal %30 {approx = true} : vector<16x1xf32> -> vector<16x1xf32>
    %32 = vector.broadcast %31 : vector<16x1xf32> to vector<16x16xf32>
    %33 = arith.mulf %28, %32 : vector<16x16xf32>
    %cst_13 = arith.constant dense<0.000000e+00> : vector<16x32xf32>
    %34 = tpu.matmul %33, %20, %cst_13 {dimension_numbers = #tpu.dot_dimension_numbers<[1], [0], [0], [1], [0, 0, 1, 1], [], []>} : vector<16x16xf32>, vector<16x32xf32>, vector<16x32xf32> -> vector<16x32xf32>
    %35 = vector.extract_strided_slice %2 {offsets = [0, 96], sizes = [32, 32], strides = [1, 1]} : vector<32x128xbf16> to vector<32x32xbf16>
    %36 = vector.extract_strided_slice %7 {offsets = [0, 96], sizes = [1, 32], strides = [1, 1]} : vector<1x128xf32> to vector<1x32xf32>
    %37 = arith.truncf %34 : vector<16x32xf32> to vector<16x32xbf16>
    %cst_14 = arith.constant dense<0.000000e+00> : vector<16x32xf32>
    %38 = tpu.matmul %37, %35, %cst_14 {dimension_numbers = #tpu.dot_dimension_numbers<[1], [0], [0], [1], [0, 0, 1, 1], [], []>} : vector<16x32xbf16>, vector<32x32xbf16>, vector<16x32xf32> -> vector<16x32xf32>
    %39 = vector.broadcast %36 : vector<1x32xf32> to vector<16x32xf32>
    %40 = arith.addf %38, %39 : vector<16x32xf32>
    %41 = arith.addf %0, %40 : vector<16x32xf32>
    %cst_15 = arith.constant dense<0.000000e+00> : vector<16xf32>
    %42 = vector.multi_reduction <add>, %41, %cst_15 [1] : vector<16x32xf32> to vector<16xf32>
    %43 = vector.shape_cast %42 : vector<16xf32> to vector<16x1xf32>
    %cst_16 = arith.constant 3.200000e+01 : f32
    %44 = vector.broadcast %cst_16 : f32 to vector<16x1xf32>
    %45 = arith.divf %43, %44 : vector<16x1xf32>
    %46 = vector.broadcast %45 : vector<16x1xf32> to vector<16x32xf32>
    %47 = arith.subf %41, %46 : vector<16x32xf32>
    %48 = arith.mulf %47, %47 : vector<16x32xf32>
    %cst_17 = arith.constant dense<0.000000e+00> : vector<16xf32>
    %49 = vector.multi_reduction <add>, %48, %cst_17 [1] : vector<16x32xf32> to vector<16xf32>
    %50 = vector.shape_cast %49 : vector<16xf32> to vector<16x1xf32>
    %cst_18 = arith.constant 3.200000e+01 : f32
    %51 = vector.broadcast %cst_18 : f32 to vector<16x1xf32>
    %52 = arith.divf %50, %51 : vector<16x1xf32>
    %53 = vector.broadcast %45 : vector<16x1xf32> to vector<16x32xf32>
    %54 = arith.subf %41, %53 : vector<16x32xf32>
    %cst_19 = arith.constant 9.99999996E-13 : f32
    %55 = vector.broadcast %cst_19 : f32 to vector<16x1xf32>
    %56 = arith.addf %52, %55 : vector<16x1xf32>
    %57 = math.rsqrt %56 : vector<16x1xf32>
    %58 = vector.broadcast %57 : vector<16x1xf32> to vector<16x32xf32>
    %59 = arith.mulf %54, %58 : vector<16x32xf32>
    %60 = vector.broadcast %8 : vector<1x32xf32> to vector<16x32xf32>
    %61 = arith.mulf %59, %60 : vector<16x32xf32>
    %62 = vector.broadcast %9 : vector<1x32xf32> to vector<16x32xf32>
    %63 = arith.addf %61, %62 : vector<16x32xf32>
    %64 = arith.truncf %63 : vector<16x32xf32> to vector<16x32xbf16>
    %cst_20 = arith.constant dense<0.000000e+00> : vector<16x64xf32>
    %65 = tpu.matmul %64, %3, %cst_20 {dimension_numbers = #tpu.dot_dimension_numbers<[1], [0], [0], [1], [0, 0, 1, 1], [], []>} : vector<16x32xbf16>, vector<32x64xbf16>, vector<16x64xf32> -> vector<16x64xf32>
    %66 = vector.broadcast %12 : vector<1x64xf32> to vector<16x64xf32>
    %67 = arith.addf %65, %66 : vector<16x64xf32>
    %68 = arith.mulf %67, %67 : vector<16x64xf32>
    %69 = arith.mulf %67, %68 : vector<16x64xf32>
    %cst_21 = arith.constant 4.471500e-02 : f32
    %70 = vector.broadcast %cst_21 : f32 to vector<16x64xf32>
    %71 = arith.mulf %70, %69 : vector<16x64xf32>
    %72 = arith.addf %67, %71 : vector<16x64xf32>
    %cst_22 = arith.constant 0.797884583 : f32
    %73 = vector.broadcast %cst_22 : f32 to vector<16x64xf32>
    %74 = arith.mulf %73, %72 : vector<16x64xf32>
    %75 = math.tanh %74 : vector<16x64xf32>
    %cst_23 = arith.constant 1.000000e+00 : f32
    %76 = vector.broadcast %cst_23 : f32 to vector<16x64xf32>
    %77 = arith.addf %76, %75 : vector<16x64xf32>
    %cst_24 = arith.constant 5.000000e-01 : f32
    %78 = vector.broadcast %cst_24 : f32 to vector<16x64xf32>
    %79 = arith.mulf %78, %77 : vector<16x64xf32>
    %80 = arith.mulf %67, %79 : vector<16x64xf32>
    %81 = arith.truncf %80 : vector<16x64xf32> to vector<16x64xbf16>
    %cst_25 = arith.constant dense<0.000000e+00> : vector<16x32xf32>
    %82 = tpu.matmul %81, %4, %cst_25 {dimension_numbers = #tpu.dot_dimension_numbers<[1], [0], [0], [1], [0, 0, 1, 1], [], []>} : vector<16x64xbf16>, vector<64x32xbf16>, vector<16x32xf32> -> vector<16x32xf32>
    %83 = vector.broadcast %13 : vector<1x32xf32> to vector<16x32xf32>
    %84 = arith.addf %82, %83 : vector<16x32xf32>
    %85 = arith.addf %63, %84 : vector<16x32xf32>
    %cst_26 = arith.constant dense<0.000000e+00> : vector<16xf32>
    %86 = vector.multi_reduction <add>, %85, %cst_26 [1] : vector<16x32xf32> to vector<16xf32>
    %87 = vector.shape_cast %86 : vector<16xf32> to vector<16x1xf32>
    %cst_27 = arith.constant 3.200000e+01 : f32
    %88 = vector.broadcast %cst_27 : f32 to vector<16x1xf32>
    %89 = arith.divf %87, %88 : vector<16x1xf32>
    %90 = vector.broadcast %89 : vector<16x1xf32> to vector<16x32xf32>
    %91 = arith.subf %85, %90 : vector<16x32xf32>
    %92 = arith.mulf %91, %91 : vector<16x32xf32>
    %cst_28 = arith.constant dense<0.000000e+00> : vector<16xf32>
    %93 = vector.multi_reduction <add>, %92, %cst_28 [1] : vector<16x32xf32> to vector<16xf32>
    %94 = vector.shape_cast %93 : vector<16xf32> to vector<16x1xf32>
    %cst_29 = arith.constant 3.200000e+01 : f32
    %95 = vector.broadcast %cst_29 : f32 to vector<16x1xf32>
    %96 = arith.divf %94, %95 : vector<16x1xf32>
    %97 = vector.broadcast %89 : vector<16x1xf32> to vector<16x32xf32>
    %98 = arith.subf %85, %97 : vector<16x32xf32>
    %cst_30 = arith.constant 9.99999996E-13 : f32
    %99 = vector.broadcast %cst_30 : f32 to vector<16x1xf32>
    %100 = arith.addf %96, %99 : vector<16x1xf32>
    %101 = math.rsqrt %100 : vector<16x1xf32>
    %102 = vector.broadcast %101 : vector<16x1xf32> to vector<16x32xf32>
    %103 = arith.mulf %98, %102 : vector<16x32xf32>
    %104 = vector.broadcast %10 : vector<1x32xf32> to vector<16x32xf32>
    %105 = arith.mulf %103, %104 : vector<16x32xf32>
    %106 = vector.broadcast %11 : vector<1x32xf32> to vector<16x32xf32>
    %107 = arith.addf %105, %106 : vector<16x32xf32>
    %c0_31 = arith.constant 0 : index
    %c0_32 = arith.constant 0 : index
    %108 = vector.load %arg4[%c0_31, %c0_32] : memref<2x16xf32, #tpu.memory_space<vmem>>, vector<2x16xf32>
    %cst_33 = arith.constant dense<0.000000e+00> : vector<2x32xf32>
    %109 = tpu.matmul %108, %107, %cst_33 {dimension_numbers = #tpu.dot_dimension_numbers<[1], [0], [0], [1], [0, 0, 1, 1], [], []>} : vector<2x16xf32>, vector<16x32xf32>, vector<2x32xf32> -> vector<2x32xf32>
    %110 = arith.truncf %109 : vector<2x32xf32> to vector<2x32xbf16>
    %cst_34 = arith.constant dense<0.000000e+00> : vector<2x128xf32>
    %111 = tpu.matmul %110, %5, %cst_34 {dimension_numbers = #tpu.dot_dimension_numbers<[1], [0], [0], [1], [0, 0, 1, 1], [], []>} : vector<2x32xbf16>, vector<32x128xbf16>, vector<2x128xf32> -> vector<2x128xf32>
    %112 = vector.broadcast %14 : vector<1x128xf32> to vector<2x128xf32>
    %113 = arith.addf %111, %112 : vector<2x128xf32>
    %c0_35 = arith.constant 0 : index
    %c0_36 = arith.constant 0 : index
    %114 = vector.load %arg5[%c0_35, %c0_36] : memref<2x128xf32, #tpu.memory_space<vmem>>, vector<2x128xf32>
    tpu.vector_store %arg5[%c0_35, %c0_36], %113 {strides = array<i32>} : memref<2x128xf32, #tpu.memory_space<vmem>>, vector<2x128xf32>,
    return
  }
}

</mosaic_0001>

<llo_original>
// kernel: tpu_custom_call.1
$region0: #{tpu_custom_call.1}
  #allocation0 [shape = 'u32[]', space=smem, size = 0x4, offset = 0x4, fixed_abs, tag = 'smem constant byte address 0x4 - core index']
  #allocation1 [shape = 'u32[144,128]{1,0:T(1,128)}', space=vmem, size = 0x12000, scoped, tag = 'internal scratch']
  %s0 = inlined_call_operand.hbm [shape: f32[16,32], index: 0, kind: input, shape index: {}]
  %s1 = inlined_call_operand.hbm [shape: bf16[160,128], index: 1, kind: input, shape index: {}]
  %s2 = inlined_call_operand.hbm [shape: f32[8,128], index: 2, kind: input, shape index: {}]
  %s3 = inlined_call_operand.hbm [shape: f32[16,16], index: 3, kind: input, shape index: {}]
  %s4 = inlined_call_operand.vmem [shape: f32[2,16], index: 4, kind: input, shape index: {}]
  %s5 = inlined_call_operand.hbm [shape: f32[2,128], index: 5, kind: output, shape index: {}]
  %s6 = sld [smem:[#allocation0]]
  $region46: #{tpu_custom_call.1} parent=0
    _
  %s8 = ssub.s32 1, %s6
  %s9 = scalar_select 0, %s8, %s6
  $region1: #{tpu_custom_call.1} parent=0
    #allocation2 [shape = 'u8[8192]{0}', space=vmem, size = 0x2000, scoped, tag = 'input window, operand 0, single buffered']
    #allocation3 [shape = 's32[1]{0}', space=sflag, size = 0x4, scoped, tag = 'scoped memory for tpu_custom_call.1']
    #allocation4 [shape = 's32[1]{0}', space=sflag, size = 0x4, scoped, tag = 'scoped memory for tpu_custom_call.1']
    #allocation5 [shape = 'u8[40960]{0}', space=vmem, size = 0xa000, scoped, tag = 'input window, operand 1, single buffered']
    #allocation6 [shape = 's32[1]{0}', space=sflag, size = 0x4, scoped, tag = 'scoped memory for tpu_custom_call.1']
    #allocation7 [shape = 'u8[4096]{0}', space=vmem, size = 0x1000, scoped, tag = 'input window, operand 2, single buffered']
    #allocation8 [shape = 'u8[8192]{0}', space=vmem, size = 0x2000, scoped, tag = 'input window, operand 3, single buffered']
    #allocation9 [shape = 's32[1]{0}', space=sflag, size = 0x4, scoped, tag = 'scoped memory for tpu_custom_call.1']
    #allocation10 [shape = 'u8[1024]{0}', space=vmem, size = 0x400, scoped, tag = 'output window, operand 0, single buffered']
    %10 = vsyncpa [#allocation3], 0
    %11 = vsyncpa [#allocation6], 0
    %12 = vsyncpa [#allocation9], 0
    %13 = vsyncpa [#allocation4], 0
    // Predicated region
    $region2: #{tpu_custom_call.1} parent=1 // pred_check
      _
    $region3: #{tpu_custom_call.1} parent=1 // pred_check_branch
      %15 = sbr.rel (0) target = $region5
    $region4: #{tpu_custom_call.1} parent=1 // pred_region
      %s17 = ssub.s32 256, 256
      %18 = vsyncadd [#allocation3], %s17
      %s19 = sshll.u32 [#allocation2], 4
      %s20 = int_to_ptr.vmem [resolvable:$true] %s19
      %25 = dma.hbm_to_vmem [thread:$0]  %s0, 256, %s20, [#allocation3], 128, 128, 8
    $region5: #{tpu_custom_call.1} parent=1 // pred_fallthru
      _
    // Predicated region
    $region6: #{tpu_custom_call.1} parent=1 // pred_check
      _
    $region7: #{tpu_custom_call.1} parent=1 // pred_check_branch
      %27 = sbr.rel (0) target = $region9
    $region8: #{tpu_custom_call.1} parent=1 // pred_region
      %s29 = ssub.s32 1280, 1280
      %30 = vsyncadd [#allocation6], %s29
      %s31 = sshll.u32 [#allocation5], 4
      %s32 = int_to_ptr.vmem [resolvable:$true] %s31
      %37 = dma.hbm_to_vmem [thread:$0]  %s1, 1280, %s32, [#allocation6], 64, 64, 4
    $region9: #{tpu_custom_call.1} parent=1 // pred_fallthru
      _
    // Predicated region
    $region10: #{tpu_custom_call.1} parent=1 // pred_check
      _
    $region11: #{tpu_custom_call.1} parent=1 // pred_check_branch
      %39 = sbr.rel (0) target = $region13
    $region12: #{tpu_custom_call.1} parent=1 // pred_region
      %s41 = ssub.s32 128, 128
      %42 = vsyncadd [#allocation6], %s41
      %s44 = sshll.u32 [#allocation7], 4
      %s45 = int_to_ptr.vmem [resolvable:$true] %s44
      %47 = dma.hbm_to_vmem [thread:$0]  %s2, 128, %s45, [#allocation6]
    $region13: #{tpu_custom_call.1} parent=1 // pred_fallthru
      _
    // Predicated region
    $region14: #{tpu_custom_call.1} parent=1 // pred_check
      _
    $region15: #{tpu_custom_call.1} parent=1 // pred_check_branch
      %49 = sbr.rel (0) target = $region17
    $region16: #{tpu_custom_call.1} parent=1 // pred_region
      %s51 = ssub.s32 256, 256
      %52 = vsyncadd [#allocation9], %s51
      %s53 = sshll.u32 [#allocation8], 4
      %s54 = int_to_ptr.vmem [resolvable:$true] %s53
      %59 = dma.hbm_to_vmem [thread:$0]  %s3, 256, %s54, [#allocation9], 128, 128, 8
    $region17: #{tpu_custom_call.1} parent=1 // pred_fallthru
      _
    // Predicated region
    $region18: #{tpu_custom_call.1} parent=1 // pred_check
      _
    $region19: #{tpu_custom_call.1} parent=1 // pred_check_branch
      %61 = sbr.rel (0) target = $region21
    $region20: #{tpu_custom_call.1} parent=1 // pred_region
      _
    $region21: #{tpu_custom_call.1} parent=1 // pred_fallthru
      _
    // Predicated region
    $region22: #{tpu_custom_call.1} parent=1 // pred_check
      _
    $region23: #{tpu_custom_call.1} parent=1 // pred_check_branch
      %63 = sbr.rel (0) target = $region25
    $region24: #{tpu_custom_call.1} parent=1 // pred_region
      %64 = dma.done [#allocation3], 256
    $region25: #{tpu_custom_call.1} parent=1 // pred_fallthru
      _
    // Predicated region
    $region26: #{tpu_custom_call.1} parent=1 // pred_check
      _
    $region27: #{tpu_custom_call.1} parent=1 // pred_check_branch
      %66 = sbr.rel (0) target = $region29
    $region28: #{tpu_custom_call.1} parent=1 // pred_region
      %67 = dma.done [#allocation6], 1280
    $region29: #{tpu_custom_call.1} parent=1 // pred_fallthru
      _
    // Predicated region
    $region30: #{tpu_custom_call.1} parent=1 // pred_check
      _
    $region31: #{tpu_custom_call.1} parent=1 // pred_check_branch
      %69 = sbr.rel (0) target = $region33
    $region32: #{tpu_custom_call.1} parent=1 // pred_region
      %70 = dma.done [#allocation6], 128
    $region33: #{tpu_custom_call.1} parent=1 // pred_fallthru
      _
    // Predicated region
    $region34: #{tpu_custom_call.1} parent=1 // pred_check
      _
    $region35: #{tpu_custom_call.1} parent=1 // pred_check_branch
      %72 = sbr.rel (0) target = $region37
    $region36: #{tpu_custom_call.1} parent=1 // pred_region
      %73 = dma.done [#allocation9], 256
    $region37: #{tpu_custom_call.1} parent=1 // pred_fallthru
      _
    %v75 = vld [vmem:[#allocation2] sm:$0xff]
    %v76 = vld [vmem:[#allocation2 + $0x8] sm:$0xff]
    %v77 = vpack.c.bf16 %v76, %v75
    %v78 = vld [vmem:[#allocation5] sm:$0xf]
    %v79 = vld [vmem:[#allocation5 + $0x4] sm:$0xf]
    %v80 = vld [vmem:[#allocation5 + $0x8] sm:$0xf]
    %v81 = vld [vmem:[#allocation5 + $0xc] sm:$0xf]
    %v82 = vld [vmem:[#allocation5 + $0x10] sm:$0xf]
    %v83 = vld [vmem:[#allocation5 + $0x14] sm:$0xf]
    %v84 = vld [vmem:[#allocation5 + $0x18] sm:$0xf]
    %v85 = vld [vmem:[#allocation5 + $0x1c] sm:$0xf]
    %v86 = vld [vmem:[#allocation5 + $0x20] sm:$0xf]
    %v87 = vld [vmem:[#allocation5 + $0x24] sm:$0xf]
    %v88 = vld [vmem:[#allocation5 + $0x28] sm:$0xf]
    %v89 = vld [vmem:[#allocation5 + $0x2c] sm:$0xf]
    %v90 = vld [vmem:[#allocation5 + $0x30] sm:$0xf]
    %v91 = vld [vmem:[#allocation5 + $0x34] sm:$0xf]
    %v92 = vld [vmem:[#allocation5 + $0x38] sm:$0xf]
    %v93 = vld [vmem:[#allocation5 + $0x3c] sm:$0xf]
    %v94 = vld [vmem:[#allocation5 + $0x40] sm:$0xf]
    %v95 = vld [vmem:[#allocation5 + $0x44] sm:$0xf]
    %v96 = vld [vmem:[#allocation5 + $0x48] sm:$0xf]
    %v97 = vld [vmem:[#allocation5 + $0x4c] sm:$0xf]
    %v98 = vld [vmem:[#allocation7] sm:$0xff]
    %v99 = vlaneseq
    %v100 = vshrl.u32 %v99, 7
    %v101 = vsub.s32 0, %v100
    %v102 = vrot.slane %v98, %v101
    %v107 = vunpack.c.l.b16 %v78
    %v108 = vunpack.c.l.b16 %v79
    %v109 = vunpack.c.l.b16 %v80
    %v110 = vunpack.c.l.b16 %v81
    %v111 = vpack.c.b16 %v108, %v107
    %v112 = vpack.c.b16 %v110, %v109
    %vm115 = vcmask 261120
    %v117 = vsel %vm115, %v77, 0
    %119 = vmatprep.subr.bf16.mxu0 0
    %120 = vmatpush1.bf16.msra.mxu0 %v111
    %121 = vmatprep.subr.bf16.mxu0 0
    %122 = vmatpush1.bf16.msra.mxu0 %v112
    %123 = vmatprep.subr.bf16.mxu0 0
    %124 = vmatpush1.bf16.msra.mxu0 0
    %125 = vmatprep.subr.bf16.mxu0 0
    %126 = vmatpush1.bf16.msra.mxu0 0
    %127 = vmatprep.subr.bf16.mxu0 0
    %128 = vmatpush1.bf16.msra.mxu0 0
    %129 = vmatprep.subr.bf16.mxu0 0
    %130 = vmatpush1.bf16.msra.mxu0 0
    %131 = vmatprep.subr.bf16.mxu0 0
    %132 = vmatpush1.bf16.msra.mxu0 0
    %133 = vmatprep.subr.bf16.mxu0 0
    %134 = vmatpush1.bf16.msra.mxu0 0
    %135 = vmatprep.subr.bf16.mxu0 0
    %136 = vmatpush1.bf16.msra.mxu0 0
    %137 = vmatprep.subr.bf16.mxu0 0
    %138 = vmatpush1.bf16.msra.mxu0 0
    %139 = vmatprep.subr.bf16.mxu0 0
    %140 = vmatpush1.bf16.msra.mxu0 0
    %141 = vmatprep.subr.bf16.mxu0 0
    %142 = vmatpush1.bf16.msra.mxu0 0
    %143 = vmatprep.subr.bf16.mxu0 0
    %144 = vmatpush1.bf16.msra.mxu0 0
    %145 = vmatprep.subr.bf16.mxu0 0
    %146 = vmatpush1.bf16.msra.mxu0 0
    %147 = vmatprep.subr.bf16.mxu0 0
    %148 = vmatpush1.bf16.msra.mxu0 0
    %149 = vmatprep.subr.bf16.mxu0 0
    %150 = vmatpush1.bf16.msra.mxu0 0
    %151 = vmatprep.mubr.bf16.mxu0 0
    %152 = vmatmul.mubr.bf16.gmra.mrb[0].mxu0 %v117
    %v153 = vpop.f32.mrb[0].mxu0
    %v154 = vadd.f32 %v102, %v153
    %v155 = vpop.f32.mrb[0].mxu0
    %v156 = vpop.f32.mrb[0].mxu0
    %v157 = vadd.f32 %v102, %v156
    %v158 = vpop.f32.mrb[0].mxu0
    %159 = vdwg.mxu0
    %v160 = vld [vmem:[#allocation8] sm:$0xff]
    %v161 = vld [vmem:[#allocation8 + $0x8] sm:$0xff]
    %164 = vrot.lane.b32.xlu0 %v154, 96
    %v165 = vpop.permute.xlu0 %164
    %166 = vrot.lane.b32.xlu0 %v157, 96
    %v167 = vpop.permute.xlu0 %166
    %v168 = vsel %vm115, %v154, 0
    %v170 = vsel %vm115, %v157, 0
    %v172 = vsel %vm115, %v165, 0
    %v174 = vsel %vm115, %v167, 0
    %176 = vmatprep.subr.mxu0 0.0
    %177 = vmatpush1.xpose.msra.mxu0 %v172
    %178 = vmatprep.subr.mxu0 0.0
    %179 = vmatpush1.xpose.msra.mxu0 %v174
    %180 = vmatprep.subr.mxu0 0.0
    %181 = vmatpush1.xpose.msra.mxu0 0.0
    %182 = vmatprep.subr.mxu0 0.0
    %183 = vmatpush1.xpose.msra.mxu0 0.0
    %184 = vmatprep.subr.mxu0 0.0
    %185 = vmatpush1.xpose.msra.mxu0 0.0
    %186 = vmatprep.subr.mxu0 0.0
    %187 = vmatpush1.xpose.msra.mxu0 0.0
    %188 = vmatprep.subr.mxu0 0.0
    %189 = vmatpush1.xpose.msra.mxu0 0.0
    %190 = vmatprep.subr.mxu0 0.0
    %191 = vmatpush1.xpose.msra.mxu0 0.0
    %192 = vmatprep.subr.mxu0 0.0
    %193 = vmatpush1.xpose.msra.mxu0 0.0
    %194 = vmatprep.subr.mxu0 0.0
    %195 = vmatpush1.xpose.msra.mxu0 0.0
    %196 = vmatprep.subr.mxu0 0.0
    %197 = vmatpush1.xpose.msra.mxu0 0.0
    %198 = vmatprep.subr.mxu0 0.0
    %199 = vmatpush1.xpose.msra.mxu0 0.0
    %200 = vmatprep.subr.mxu0 0.0
    %201 = vmatpush1.xpose.msra.mxu0 0.0
    %202 = vmatprep.subr.mxu0 0.0
    %203 = vmatpush1.xpose.msra.mxu0 0.0
    %204 = vmatprep.subr.mxu0 0.0
    %205 = vmatpush1.xpose.msra.mxu0 0.0
    %206 = vmatprep.subr.mxu0 0.0
    %207 = vmatpush1.xpose.msra.mxu0 0.0
    %208 = vmatprep.subr.mxu0 0.0
    %209 = vmatpush1.xpose.msra.mxu0 0.0
    %210 = vmatprep.subr.mxu0 0.0
    %211 = vmatpush1.xpose.msra.mxu0 0.0
    %212 = vmatprep.subr.mxu0 0.0
    %213 = vmatpush1.xpose.msra.mxu0 0.0
    %214 = vmatprep.subr.mxu0 0.0
    %215 = vmatpush1.xpose.msra.mxu0 0.0
    %216 = vmatprep.subr.mxu0 0.0
    %217 = vmatpush1.xpose.msra.mxu0 0.0
    %218 = vmatprep.subr.mxu0 0.0
    %219 = vmatpush1.xpose.msra.mxu0 0.0
    %220 = vmatprep.subr.mxu0 0.0
    %221 = vmatpush1.xpose.msra.mxu0 0.0
    %222 = vmatprep.subr.mxu0 0.0
    %223 = vmatpush1.xpose.msra.mxu0 0.0
    %224 = vmatprep.subr.mxu0 0.0
    %225 = vmatpush1.xpose.msra.mxu0 0.0
    %226 = vmatprep.subr.mxu0 0.0
    %227 = vmatpush1.xpose.msra.mxu0 0.0
    %228 = vmatprep.subr.mxu0 0.0
    %229 = vmatpush1.xpose.msra.mxu0 0.0
    %230 = vmatprep.subr.mxu0 0.0
    %231 = vmatpush1.xpose.msra.mxu0 0.0
    %232 = vmatprep.subr.mxu0 0.0
    %233 = vmatpush1.xpose.msra.mxu0 0.0
    %234 = vmatprep.subr.mxu0 0.0
    %235 = vmatpush1.xpose.msra.mxu0 0.0
    %236 = vmatprep.subr.mxu0 0.0
    %237 = vmatpush1.xpose.msra.mxu0 0.0
    %238 = vmatprep.subr.mxu0 0.0
    %239 = vmatpush1.xpose.msra.mxu0 0.0
    %240 = vmatprep.mubr.f32.mxu0 0.0
    %241 = vmatmul.mubr.f32.gmra.mrb[0].mxu0 %v168
    %v242 = vpop.f32.mrb[0].mxu0
    %v243 = vadd.f32 %v160, %v242
    %v244 = vpop.f32.mrb[0].mxu0
    %245 = vmatprep.mubr.f32.mxu0 0.0
    %246 = vmatmul.mubr.f32.gmra.mrb[0].mxu0 %v170
    %v247 = vpop.f32.mrb[0].mxu0
    %v248 = vadd.f32 %v161, %v247
    %v249 = vpop.f32.mrb[0].mxu0
    %250 = vdwg.mxu0
    %vm251 = vcmask 130048
    %v252 = vsel %vm251, %v243, -inf
    %253 = vmax.xlane.f32.xlu0 %v252
    %v254 = vpop.xlane.xlu0 %253
    %v255 = vsel %vm251, %v248, -inf
    %256 = vmax.xlane.f32.xlu0 %v255
    %v257 = vpop.xlane.xlu0 %256
    %v258 = vsub.f32 %v243, %v254
    %v259 = vsub.f32 %v248, %v257
    %v260 = vmul.f32 %v258, 1.442695
    %v261 = vpow.pop %v260
    %v262 = vmul.f32 %v259, 1.442695
    %v263 = vpow.pop %v262
    %v264 = vsel %vm251, %v261, 0.0
    %265 = vadd.xlane.f32.xlu0 %v264
    %v266 = vpop.xlane.xlu0 %265
    %v267 = vsel %vm251, %v263, 0.0
    %268 = vadd.xlane.f32.xlu0 %v267
    %v269 = vpop.xlane.xlu0 %268
    %v270 = vrcp.pop %v266
    %v271 = vrcp.pop %v269
    %v272 = vmul.f32 %v261, %v270
    %v273 = vmul.f32 %v263, %v271
    %274 = vrot.lane.b32.xlu0 %v154, 64
    %v275 = vpop.permute.xlu0 %274
    %276 = vrot.lane.b32.xlu0 %v157, 64
    %v277 = vpop.permute.xlu0 %276
    %v281 = vsel %vm251, %v272, 0
    %v284 = vsel %vm251, %v273, 0
    %286 = vmatprep.subr.mxu0 0.0
    %287 = vmatpush1.msra.mxu0 %v275
    %288 = vmatprep.subr.mxu0 0.0
    %289 = vmatpush1.msra.mxu0 %v277
    %290 = vmatprep.subr.mxu0 0.0
    %291 = vmatpush1.msra.mxu0 0.0
    %292 = vmatprep.subr.mxu0 0.0
    %293 = vmatpush1.msra.mxu0 0.0
    %294 = vmatprep.subr.mxu0 0.0
    %295 = vmatpush1.msra.mxu0 0.0
    %296 = vmatprep.subr.mxu0 0.0
    %297 = vmatpush1.msra.mxu0 0.0
    %298 = vmatprep.subr.mxu0 0.0
    %299 = vmatpush1.msra.mxu0 0.0
    %300 = vmatprep.subr.mxu0 0.0
    %301 = vmatpush1.msra.mxu0 0.0
    %302 = vmatprep.subr.mxu0 0.0
    %303 = vmatpush1.msra.mxu0 0.0
    %304 = vmatprep.subr.mxu0 0.0
    %305 = vmatpush1.msra.mxu0 0.0
    %306 = vmatprep.subr.mxu0 0.0
    %307 = vmatpush1.msra.mxu0 0.0
    %308 = vmatprep.subr.mxu0 0.0
    %309 = vmatpush1.msra.mxu0 0.0
    %310 = vmatprep.subr.mxu0 0.0
    %311 = vmatpush1.msra.mxu0 0.0
    %312 = vmatprep.subr.mxu0 0.0
    %313 = vmatpush1.msra.mxu0 0.0
    %314 = vmatprep.subr.mxu0 0.0
    %315 = vmatpush1.msra.mxu0 0.0
    %316 = vmatprep.subr.mxu0 0.0
    %317 = vmatpush1.msra.mxu0 0.0
    %318 = vmatprep.subr.mxu0 0.0
    %319 = vmatpush1.msra.mxu0 0.0
    %320 = vmatprep.subr.mxu0 0.0
    %321 = vmatpush1.msra.mxu0 0.0
    %322 = vmatprep.subr.mxu0 0.0
    %323 = vmatpush1.msra.mxu0 0.0
    %324 = vmatprep.subr.mxu0 0.0
    %325 = vmatpush1.msra.mxu0 0.0
    %326 = vmatprep.subr.mxu0 0.0
    %327 = vmatpush1.msra.mxu0 0.0
    %328 = vmatprep.subr.mxu0 0.0
    %329 = vmatpush1.msra.mxu0 0.0
    %330 = vmatprep.subr.mxu0 0.0
    %331 = vmatpush1.msra.mxu0 0.0
    %332 = vmatprep.subr.mxu0 0.0
    %333 = vmatpush1.msra.mxu0 0.0
    %334 = vmatprep.subr.mxu0 0.0
    %335 = vmatpush1.msra.mxu0 0.0
    %336 = vmatprep.subr.mxu0 0.0
    %337 = vmatpush1.msra.mxu0 0.0
    %338 = vmatprep.subr.mxu0 0.0
    %339 = vmatpush1.msra.mxu0 0.0
    %340 = vmatprep.subr.mxu0 0.0
    %341 = vmatpush1.msra.mxu0 0.0
    %342 = vmatprep.subr.mxu0 0.0
    %343 = vmatpush1.msra.mxu0 0.0
    %344 = vmatprep.subr.mxu0 0.0
    %345 = vmatpush1.msra.mxu0 0.0
    %346 = vmatprep.subr.mxu0 0.0
    %347 = vmatpush1.msra.mxu0 0.0
    %348 = vmatprep.subr.mxu0 0.0
    %349 = vmatpush1.msra.mxu0 0.0
    %350 = vmatprep.mubr.f32.mxu0 0.0
    %351 = vmatmul.mubr.f32.gmra.mrb[0].mxu0 %v281
    %v352 = vpop.f32.mrb[0].mxu0
    %v353 = vadd.f32 0.0, %v352
    %v354 = vpop.f32.mrb[0].mxu0
    %355 = vmatprep.mubr.f32.mxu0 0.0
    %356 = vmatmul.mubr.f32.gmra.mrb[0].mxu0 %v284
    %v357 = vpop.f32.mrb[0].mxu0
    %v358 = vadd.f32 0.0, %v357
    %v359 = vpop.f32.mrb[0].mxu0
    %360 = vdwg.mxu0
    %v361 = vpack.c.bf16 %v358, %v353
    %362 = vrot.lane.b32.xlu0 %v111, 32
    %v363 = vpop.permute.xlu0 %362
    %364 = vrot.lane.b32.xlu0 %v112, 32
    %v365 = vpop.permute.xlu0 %364
    %369 = vrot.lane.b32.xlu0 %v102, 32
    %v370 = vpop.permute.xlu0 %369
    %v373 = vsel %vm115, %v361, 0
    %375 = vmatprep.subr.bf16.mxu0 0
    %376 = vmatpush1.bf16.msra.mxu0 %v363
    %377 = vmatprep.subr.bf16.mxu0 0
    %378 = vmatpush1.bf16.msra.mxu0 %v365
    %379 = vmatprep.subr.bf16.mxu0 0
    %380 = vmatpush1.bf16.msra.mxu0 0
    %381 = vmatprep.subr.bf16.mxu0 0
    %382 = vmatpush1.bf16.msra.mxu0 0
    %383 = vmatprep.subr.bf16.mxu0 0
    %384 = vmatpush1.bf16.msra.mxu0 0
    %385 = vmatprep.subr.bf16.mxu0 0
    %386 = vmatpush1.bf16.msra.mxu0 0
    %387 = vmatprep.subr.bf16.mxu0 0
    %388 = vmatpush1.bf16.msra.mxu0 0
    %389 = vmatprep.subr.bf16.mxu0 0
    %390 = vmatpush1.bf16.msra.mxu0 0
    %391 = vmatprep.subr.bf16.mxu0 0
    %392 = vmatpush1.bf16.msra.mxu0 0
    %393 = vmatprep.subr.bf16.mxu0 0
    %394 = vmatpush1.bf16.msra.mxu0 0
    %395 = vmatprep.subr.bf16.mxu0 0
    %396 = vmatpush1.bf16.msra.mxu0 0
    %397 = vmatprep.subr.bf16.mxu0 0
    %398 = vmatpush1.bf16.msra.mxu0 0
    %399 = vmatprep.subr.bf16.mxu0 0
    %400 = vmatpush1.bf16.msra.mxu0 0
    %401 = vmatprep.subr.bf16.mxu0 0
    %402 = vmatpush1.bf16.msra.mxu0 0
    %403 = vmatprep.subr.bf16.mxu0 0
    %404 = vmatpush1.bf16.msra.mxu0 0
    %405 = vmatprep.subr.bf16.mxu0 0
    %406 = vmatpush1.bf16.msra.mxu0 0
    %407 = vmatprep.mubr.bf16.mxu0 0
    %408 = vmatmul.mubr.bf16.gmra.mrb[0].mxu0 %v373
    %v409 = vpop.f32.mrb[0].mxu0
    %v410 = vadd.f32 %v370, %v409
    %v411 = vpop.f32.mrb[0].mxu0
    %v412 = vpop.f32.mrb[0].mxu0
    %v413 = vadd.f32 %v370, %v412
    %v414 = vpop.f32.mrb[0].mxu0
    %415 = vdwg.mxu0
    %v416 = vadd.f32 %v75, %v410
    %v417 = vadd.f32 %v76, %v413
    %v418 = vsel %vm115, %v416, 0.0
    %419 = vadd.xlane.f32.xlu0 %v418
    %v420 = vpop.xlane.xlu0 %419
    %v421 = vsel %vm115, %v417, 0.0
    %422 = vadd.xlane.f32.xlu0 %v421
    %v423 = vpop.xlane.xlu0 %422
    %v424 = vrcp.pop 32.0
    %v425 = vmul.f32 %v420, %v424
    %v426 = vmul.f32 %v423, %v424
    %v427 = vsub.f32 %v416, %v425
    %v428 = vsub.f32 %v417, %v426
    %v429 = vmul.f32 %v427, %v427
    %v430 = vmul.f32 %v428, %v428
    %v431 = vsel %vm115, %v429, 0.0
    %432 = vadd.xlane.f32.xlu0 %v431
    %v433 = vpop.xlane.xlu0 %432
    %v434 = vsel %vm115, %v430, 0.0
    %435 = vadd.xlane.f32.xlu0 %v434
    %v436 = vpop.xlane.xlu0 %435
    %v437 = vmul.f32 %v433, %v424
    %v438 = vmul.f32 %v436, %v424
    %v439 = vadd.f32 %v437, 1e-12
    %v440 = vadd.f32 %v438, 1e-12
    %v441 = vrsqrt.pop %v439
    %v442 = vrsqrt.pop %v440
    %v443 = vmul.f32 %v427, %v441
    %v444 = vmul.f32 %v428, %v442
    %v445 = vlaneseq
    %v446 = vshrl.u32 %v445, 7
    %v447 = vsub.s32 1, %v446
    %v448 = vrot.slane %v98, %v447
    %v449 = vmul.f32 %v443, %v448
    %v450 = vmul.f32 %v444, %v448
    %452 = vrot.lane.b32.xlu0 %v448, 96
    %v453 = vpop.permute.xlu0 %452
    %v455 = vadd.f32 %v449, %v453
    %v456 = vadd.f32 %v450, %v453
    %v457 = vpack.c.bf16 %v456, %v455
    %v458 = vlaneseq
    %v459 = vshrl.u32 %v458, 7
    %v460 = vsub.s32 2, %v459
    %v461 = vrot.slane %v98, %v460
    %v466 = vunpack.c.l.b16 %v82
    %v467 = vunpack.c.l.b16 %v83
    %v468 = vunpack.c.l.b16 %v84
    %v469 = vunpack.c.l.b16 %v85
    %v470 = vpack.c.b16 %v467, %v466
    %v471 = vpack.c.b16 %v469, %v468
    %v475 = vsel %vm115, %v457, 0
    %477 = vmatprep.subr.bf16.mxu0 0
    %478 = vmatpush1.bf16.msra.mxu0 %v470
    %479 = vmatprep.subr.bf16.mxu0 0
    %480 = vmatpush1.bf16.msra.mxu0 %v471
    %481 = vmatprep.subr.bf16.mxu0 0
    %482 = vmatpush1.bf16.msra.mxu0 0
    %483 = vmatprep.subr.bf16.mxu0 0
    %484 = vmatpush1.bf16.msra.mxu0 0
    %485 = vmatprep.subr.bf16.mxu0 0
    %486 = vmatpush1.bf16.msra.mxu0 0
    %487 = vmatprep.subr.bf16.mxu0 0
    %488 = vmatpush1.bf16.msra.mxu0 0
    %489 = vmatprep.subr.bf16.mxu0 0
    %490 = vmatpush1.bf16.msra.mxu0 0
    %491 = vmatprep.subr.bf16.mxu0 0
    %492 = vmatpush1.bf16.msra.mxu0 0
    %493 = vmatprep.subr.bf16.mxu0 0
    %494 = vmatpush1.bf16.msra.mxu0 0
    %495 = vmatprep.subr.bf16.mxu0 0
    %496 = vmatpush1.bf16.msra.mxu0 0
    %497 = vmatprep.subr.bf16.mxu0 0
    %498 = vmatpush1.bf16.msra.mxu0 0
    %499 = vmatprep.subr.bf16.mxu0 0
    %500 = vmatpush1.bf16.msra.mxu0 0
    %501 = vmatprep.subr.bf16.mxu0 0
    %502 = vmatpush1.bf16.msra.mxu0 0
    %503 = vmatprep.subr.bf16.mxu0 0
    %504 = vmatpush1.bf16.msra.mxu0 0
    %505 = vmatprep.subr.bf16.mxu0 0
    %506 = vmatpush1.bf16.msra.mxu0 0
    %507 = vmatprep.subr.bf16.mxu0 0
    %508 = vmatpush1.bf16.msra.mxu0 0
    %509 = vmatprep.mubr.bf16.mxu0 0
    %510 = vmatmul.mubr.bf16.gmra.mrb[0].mxu0 %v475
    %v511 = vpop.f32.mrb[0].mxu0
    %v512 = vadd.f32 %v461, %v511
    %v513 = vpop.f32.mrb[0].mxu0
    %v514 = vpop.f32.mrb[0].mxu0
    %v515 = vadd.f32 %v461, %v514
    %v516 = vpop.f32.mrb[0].mxu0
    %517 = vdwg.mxu0
    %v518 = vmul.f32 %v512, %v512
    %v519 = vmul.f32 %v515, %v515
    %v520 = vmul.f32 %v512, %v518
    %v521 = vmul.f32 %v515, %v519
    %v522 = vmul.f32 %v520, 0.044715
    %v523 = vmul.f32 %v521, 0.044715
    %v524 = vadd.f32 %v512, %v522
    %v525 = vadd.f32 %v515, %v523
    %v526 = vmul.f32 %v524, 0.7978846
    %v527 = vmul.f32 %v525, 0.7978846
    %v528 = vtanh.pop %v526
    %v529 = vtanh.pop %v527
    %v530 = vadd.f32 %v528, 1.0
    %v531 = vadd.f32 %v529, 1.0
    %v532 = vmul.f32 %v530, 0.5
    %v533 = vmul.f32 %v531, 0.5
    %v534 = vmul.f32 %v512, %v532
    %v535 = vmul.f32 %v515, %v533
    %v536 = vpack.c.bf16 %v535, %v534
    %v545 = vunpack.c.l.b16 %v86
    %v546 = vunpack.c.l.b16 %v87
    %v547 = vunpack.c.l.b16 %v88
    %v548 = vunpack.c.l.b16 %v89
    %v549 = vunpack.c.l.b16 %v90
    %v550 = vunpack.c.l.b16 %v91
    %v551 = vunpack.c.l.b16 %v92
    %v552 = vunpack.c.l.b16 %v93
    %v553 = vpack.c.b16 %v546, %v545
    %v554 = vpack.c.b16 %v548, %v547
    %v555 = vpack.c.b16 %v550, %v549
    %v556 = vpack.c.b16 %v552, %v551
    %562 = vrot.lane.b32.xlu0 %v461, 64
    %v563 = vpop.permute.xlu0 %562
    %vm565 = vcmask 523264
    %v567 = vsel %vm565, %v536, 0
    %569 = vmatprep.subr.bf16.mxu0 0
    %570 = vmatpush1.bf16.msra.mxu0 %v553
    %571 = vmatprep.subr.bf16.mxu0 0
    %572 = vmatpush1.bf16.msra.mxu0 %v554
    %573 = vmatprep.subr.bf16.mxu0 0
    %574 = vmatpush1.bf16.msra.mxu0 %v555
    %575 = vmatprep.subr.bf16.mxu0 0
    %576 = vmatpush1.bf16.msra.mxu0 %v556
    %577 = vmatprep.subr.bf16.mxu0 0
    %578 = vmatpush1.bf16.msra.mxu0 0
    %579 = vmatprep.subr.bf16.mxu0 0
    %580 = vmatpush1.bf16.msra.mxu0 0
    %581 = vmatprep.subr.bf16.mxu0 0
    %582 = vmatpush1.bf16.msra.mxu0 0
    %583 = vmatprep.subr.bf16.mxu0 0
    %584 = vmatpush1.bf16.msra.mxu0 0
    %585 = vmatprep.subr.bf16.mxu0 0
    %586 = vmatpush1.bf16.msra.mxu0 0
    %587 = vmatprep.subr.bf16.mxu0 0
    %588 = vmatpush1.bf16.msra.mxu0 0
    %589 = vmatprep.subr.bf16.mxu0 0
    %590 = vmatpush1.bf16.msra.mxu0 0
    %591 = vmatprep.subr.bf16.mxu0 0
    %592 = vmatpush1.bf16.msra.mxu0 0
    %593 = vmatprep.subr.bf16.mxu0 0
    %594 = vmatpush1.bf16.msra.mxu0 0
    %595 = vmatprep.subr.bf16.mxu0 0
    %596 = vmatpush1.bf16.msra.mxu0 0
    %597 = vmatprep.subr.bf16.mxu0 0
    %598 = vmatpush1.bf16.msra.mxu0 0
    %599 = vmatprep.subr.bf16.mxu0 0
    %600 = vmatpush1.bf16.msra.mxu0 0
    %601 = vmatprep.mubr.bf16.mxu0 0
    %602 = vmatmul.mubr.bf16.gmra.mrb[0].mxu0 %v567
    %v603 = vpop.f32.mrb[0].mxu0
    %v604 = vadd.f32 %v563, %v603
    %v605 = vpop.f32.mrb[0].mxu0
    %v606 = vpop.f32.mrb[0].mxu0
    %v607 = vadd.f32 %v563, %v606
    %v608 = vpop.f32.mrb[0].mxu0
    %609 = vdwg.mxu0
    %v610 = vadd.f32 %v455, %v604
    %v611 = vadd.f32 %v456, %v607
    %v612 = vsel %vm115, %v610, 0.0
    %613 = vadd.xlane.f32.xlu0 %v612
    %v614 = vpop.xlane.xlu0 %613
    %v615 = vsel %vm115, %v611, 0.0
    %616 = vadd.xlane.f32.xlu0 %v615
    %v617 = vpop.xlane.xlu0 %616
    %v618 = vmul.f32 %v614, %v424
    %v619 = vmul.f32 %v617, %v424
    %v620 = vsub.f32 %v610, %v618
    %v621 = vsub.f32 %v611, %v619
    %v622 = vmul.f32 %v620, %v620
    %v623 = vmul.f32 %v621, %v621
    %v624 = vsel %vm115, %v622, 0.0
    %625 = vadd.xlane.f32.xlu0 %v624
    %v626 = vpop.xlane.xlu0 %625
    %v627 = vsel %vm115, %v623, 0.0
    %628 = vadd.xlane.f32.xlu0 %v627
    %v629 = vpop.xlane.xlu0 %628
    %v630 = vmul.f32 %v626, %v424
    %v631 = vmul.f32 %v629, %v424
    %v632 = vadd.f32 %v630, 1e-12
    %v633 = vadd.f32 %v631, 1e-12
    %v634 = vrsqrt.pop %v632
    %v635 = vrsqrt.pop %v633
    %v636 = vmul.f32 %v620, %v634
    %v637 = vmul.f32 %v621, %v635
    %638 = vrot.lane.b32.xlu0 %v448, 64
    %v639 = vpop.permute.xlu0 %638
    %v641 = vmul.f32 %v636, %v639
    %v642 = vmul.f32 %v637, %v639
    %643 = vrot.lane.b32.xlu0 %v448, 32
    %v644 = vpop.permute.xlu0 %643
    %v646 = vadd.f32 %v641, %v644
    %v647 = vadd.f32 %v642, %v644
    %v648 = vld [vmem:[%s4] sm:$0x3]
    %v650 = vsel %vm251, %v648, 0
    %652 = vmatprep.subr.mxu0 0.0
    %653 = vmatpush1.msra.mxu0 %v646
    %654 = vmatprep.subr.mxu0 0.0
    %655 = vmatpush1.msra.mxu0 %v647
    %656 = vmatprep.subr.mxu0 0.0
    %657 = vmatpush1.msra.mxu0 0.0
    %658 = vmatprep.subr.mxu0 0.0
    %659 = vmatpush1.msra.mxu0 0.0
    %660 = vmatprep.subr.mxu0 0.0
    %661 = vmatpush1.msra.mxu0 0.0
    %662 = vmatprep.subr.mxu0 0.0
    %663 = vmatpush1.msra.mxu0 0.0
    %664 = vmatprep.subr.mxu0 0.0
    %665 = vmatpush1.msra.mxu0 0.0
    %666 = vmatprep.subr.mxu0 0.0
    %667 = vmatpush1.msra.mxu0 0.0
    %668 = vmatprep.subr.mxu0 0.0
    %669 = vmatpush1.msra.mxu0 0.0
    %670 = vmatprep.subr.mxu0 0.0
    %671 = vmatpush1.msra.mxu0 0.0
    %672 = vmatprep.subr.mxu0 0.0
    %673 = vmatpush1.msra.mxu0 0.0
    %674 = vmatprep.subr.mxu0 0.0
    %675 = vmatpush1.msra.mxu0 0.0
    %676 = vmatprep.subr.mxu0 0.0
    %677 = vmatpush1.msra.mxu0 0.0
    %678 = vmatprep.subr.mxu0 0.0
    %679 = vmatpush1.msra.mxu0 0.0
    %680 = vmatprep.subr.mxu0 0.0
    %681 = vmatpush1.msra.mxu0 0.0
    %682 = vmatprep.subr.mxu0 0.0
    %683 = vmatpush1.msra.mxu0 0.0
    %684 = vmatprep.subr.mxu0 0.0
    %685 = vmatpush1.msra.mxu0 0.0
    %686 = vmatprep.subr.mxu0 0.0
    %687 = vmatpush1.msra.mxu0 0.0
    %688 = vmatprep.subr.mxu0 0.0
    %689 = vmatpush1.msra.mxu0 0.0
    %690 = vmatprep.subr.mxu0 0.0
    %691 = vmatpush1.msra.mxu0 0.0
    %692 = vmatprep.subr.mxu0 0.0
    %693 = vmatpush1.msra.mxu0 0.0
    %694 = vmatprep.subr.mxu0 0.0
    %695 = vmatpush1.msra.mxu0 0.0
    %696 = vmatprep.subr.mxu0 0.0
    %697 = vmatpush1.msra.mxu0 0.0
    %698 = vmatprep.subr.mxu0 0.0
    %699 = vmatpush1.msra.mxu0 0.0
    %700 = vmatprep.subr.mxu0 0.0
    %701 = vmatpush1.msra.mxu0 0.0
    %702 = vmatprep.subr.mxu0 0.0
    %703 = vmatpush1.msra.mxu0 0.0
    %704 = vmatprep.subr.mxu0 0.0
    %705 = vmatpush1.msra.mxu0 0.0
    %706 = vmatprep.subr.mxu0 0.0
    %707 = vmatpush1.msra.mxu0 0.0
    %708 = vmatprep.subr.mxu0 0.0
    %709 = vmatpush1.msra.mxu0 0.0
    %710 = vmatprep.subr.mxu0 0.0
    %711 = vmatpush1.msra.mxu0 0.0
    %712 = vmatprep.subr.mxu0 0.0
    %713 = vmatpush1.msra.mxu0 0.0
    %714 = vmatprep.subr.mxu0 0.0
    %715 = vmatpush1.msra.mxu0 0.0
    %716 = vmatprep.mubr.f32.mxu0 0.0
    %717 = vmatmul.mubr.f32.gmra.mrb[0].mxu0 %v650
    %v718 = vpop.f32.mrb[0].mxu0
    %v719 = vadd.f32 0.0, %v718
    %v720 = vpop.f32.mrb[0].mxu0
    %721 = vdwg.mxu0
    %v722 = vpack.c.bf16 %v719, %v719
    %v723 = vlaneseq
    %v724 = vshrl.u32 %v723, 7
    %v725 = vsub.s32 3, %v724
    %v726 = vrot.slane %v98, %v725
    %v731 = vunpack.c.l.b16 %v94
    %v732 = vunpack.c.l.b16 %v95
    %v733 = vunpack.c.l.b16 %v96
    %v734 = vunpack.c.l.b16 %v97
    %v735 = vpack.c.b16 %v732, %v731
    %v736 = vpack.c.b16 %v734, %v733
    %v740 = vsel %vm115, %v722, 0
    %742 = vmatprep.subr.bf16.mxu0 0
    %743 = vmatpush1.bf16.msra.mxu0 %v735
    %744 = vmatprep.subr.bf16.mxu0 0
    %745 = vmatpush1.bf16.msra.mxu0 %v736
    %746 = vmatprep.subr.bf16.mxu0 0
    %747 = vmatpush1.bf16.msra.mxu0 0
    %748 = vmatprep.subr.bf16.mxu0 0
    %749 = vmatpush1.bf16.msra.mxu0 0
    %750 = vmatprep.subr.bf16.mxu0 0
    %751 = vmatpush1.bf16.msra.mxu0 0
    %752 = vmatprep.subr.bf16.mxu0 0
    %753 = vmatpush1.bf16.msra.mxu0 0
    %754 = vmatprep.subr.bf16.mxu0 0
    %755 = vmatpush1.bf16.msra.mxu0 0
    %756 = vmatprep.subr.bf16.mxu0 0
    %757 = vmatpush1.bf16.msra.mxu0 0
    %758 = vmatprep.subr.bf16.mxu0 0
    %759 = vmatpush1.bf16.msra.mxu0 0
    %760 = vmatprep.subr.bf16.mxu0 0
    %761 = vmatpush1.bf16.msra.mxu0 0
    %762 = vmatprep.subr.bf16.mxu0 0
    %763 = vmatpush1.bf16.msra.mxu0 0
    %764 = vmatprep.subr.bf16.mxu0 0
    %765 = vmatpush1.bf16.msra.mxu0 0
    %766 = vmatprep.subr.bf16.mxu0 0
    %767 = vmatpush1.bf16.msra.mxu0 0
    %768 = vmatprep.subr.bf16.mxu0 0
    %769 = vmatpush1.bf16.msra.mxu0 0
    %770 = vmatprep.subr.bf16.mxu0 0
    %771 = vmatpush1.bf16.msra.mxu0 0
    %772 = vmatprep.subr.bf16.mxu0 0
    %773 = vmatpush1.bf16.msra.mxu0 0
    %774 = vmatprep.mubr.bf16.mxu0 0
    %775 = vmatmul.mubr.bf16.gmra.mrb[0].mxu0 %v740
    %v776 = vpop.f32.mrb[0].mxu0
    %v777 = vadd.f32 %v726, %v776
    %v778 = vpop.f32.mrb[0].mxu0
    %v779 = vpop.f32.mrb[0].mxu0
    %v780 = vpop.f32.mrb[0].mxu0
    %781 = vdwg.mxu0
    %782 = vst [vmem:[#allocation10] sm:$0x3] %v777
    // Predicated region
    $region38: #{tpu_custom_call.1} parent=1 // pred_check
      _
    $region39: #{tpu_custom_call.1} parent=1 // pred_check_branch
      %784 = sbr.rel (0) target = $region41
    $region40: #{tpu_custom_call.1} parent=1 // pred_region
      %s786 = ssub.s32 32, 32
      %787 = vsyncadd [#allocation4], %s786
      %s789 = sshll.u32 [#allocation10], 4
      %s790 = int_to_ptr.vmem [resolvable:$true] %s789
      %792 = dma.vmem_to_hbm [thread:$0]  %s790, 32, %s5, [#allocation4]
    $region41: #{tpu_custom_call.1} parent=1 // pred_fallthru
      _
    // Predicated region
    $region42: #{tpu_custom_call.1} parent=1 // pred_check
      _
    $region43: #{tpu_custom_call.1} parent=1 // pred_check_branch
      %794 = sbr.rel (0) target = $region45
    $region44: #{tpu_custom_call.1} parent=1 // pred_region
      %795 = dma.done [#allocation4], 32
    $region45: #{tpu_custom_call.1} parent=1 // pred_fallthru
      _
    %796 = vsyncpa [#allocation3], 1
    %797 = vsyncpa [#allocation6], 1
    %798 = vsyncpa [#allocation9], 1
    %799 = vsyncpa [#allocation4], 1

</llo_original>
